<compile_context>
chip_gen: v6e
topology: v6e:2x2x1
jax: 0.10.0
libtpu: 0.0.40
codegen_flags: <defaults>
</compile_context>

<pallas_src>
import functools

import jax
import jax.numpy as jnp
from jax.experimental import pallas as pl
from jax.experimental.pallas import tpu as pltpu


_LANE = 128
_UNROLL_LIMIT = 512  # use the unrolled VPU channel mix when Cin*(Cin+Cout) <= this


# ---------------------------------------------------------------------------
# Kernel A (small channel counts): unrolled VPU channel mix, weights in SMEM.
#   x_ref : (Bn, Cin, T)  VMEM   (spatial pixels on lanes)
#   w/b   : SMEM (tiny, resident for the whole grid)
#   o_ref : (Bn, Cout, T) VMEM
# ---------------------------------------------------------------------------
def _ir_kernel_unrolled(w1_ref, b1_ref, w2_ref, b2_ref, x_ref, o_ref, *, slope):
    cin = w1_ref.shape[0]
    cout = w2_ref.shape[0]

    x = x_ref[...]
    if x.dtype != jnp.float32:
        x = x.astype(jnp.float32)
    xs = [x[:, i, :] for i in range(cin)]          # Cin x (Bn, T)

    # first 1x1 conv + LeakyReLU(0.2)
    hs = []
    for o in range(cin):
        acc = xs[0] * w1_ref[o, 0]
        for i in range(1, cin):
            acc = acc + xs[i] * w1_ref[o, i]
        acc = acc + b1_ref[o]
        hs.append(jnp.where(acc >= 0.0, acc, slope * acc))

    # second 1x1 conv
    outs = []
    for o in range(cout):
        acc = hs[0] * w2_ref[o, 0]
        for i in range(1, cin):
            acc = acc + hs[i] * w2_ref[o, i]
        outs.append(acc + b2_ref[o])

    o_ref[...] = jnp.stack(outs, axis=1).astype(o_ref.dtype)   # (Bn, Cout, T)


# ---------------------------------------------------------------------------
# Kernel B (large channel counts): MXU matmuls, weights resident in VMEM.
# (Not exercised by the small test shapes; kept for generality.)
# ---------------------------------------------------------------------------
def _ir_kernel_mxu(w1_ref, b1_ref, w2_ref, b2_ref, x_ref, o_ref, *, slope):
    w1 = w1_ref[...]
    w2 = w2_ref[...]
    b1 = b1_ref[...]          # (Cin, 1)
    b2 = b2_ref[...]          # (Cout, 1)
    for b in range(x_ref.shape[0]):
        x = x_ref[b]
        if x.dtype != jnp.float32:
            x = x.astype(jnp.float32)
        h = jnp.dot(w1, x, preferred_element_type=jnp.float32) + b1
        h = jnp.where(h >= 0.0, h, slope * h)
        y = jnp.dot(w2, h, preferred_element_type=jnp.float32) + b2
        o_ref[b] = y.astype(o_ref.dtype)


# ---------------------------------------------------------------------------
# Tile planning from a VMEM byte budget (generation-safe) instead of fixed caps.
# ---------------------------------------------------------------------------
def _plan_tiles(N, Cin, Cout, HWp, elem_bytes):
    target_step_bytes = 2 << 20      # amortize ~0.35us fixed per-step overhead
    max_step_bytes = 12 << 20        # 2x double-buffered in+out blocks <~24 MiB (v7x-safe)
    row_bytes = (Cin + Cout) * elem_bytes          # in+out bytes per image per pixel

    if HWp <= _LANE:
        t = HWp                                    # full-extent spatial block
    else:                                          # HWp is a multiple of 128 here
        t_budget = max(_LANE, (max_step_bytes // row_bytes) // _LANE * _LANE)
        t = min(HWp, t_budget)

    Bn = 1
    if t == HWp:                                   # small images: block over batch too
        step = row_bytes * t
        if step < target_step_bytes and N > 1:
            Bn = int(min(N, max(1, target_step_bytes // step)))

    def n_steps(bn, tt):
        return pl.cdiv(N, bn) * pl.cdiv(HWp, tt)

    # Keep the parallel grid wide enough to feed both v7x TensorCores and the
    # software pipeline.
    while n_steps(Bn, t) < 4:
        if Bn > 1:
            Bn = max(1, Bn // 2)
        elif t > _LANE:
            t = max(_LANE, (t // 2) // _LANE * _LANE)
        else:
            break

    step_block_bytes = Bn * row_bytes * t
    vmem_limit = int(min(max(2 * step_block_bytes + (4 << 20), 16 << 20), 48 << 20))
    return Bn, t, vmem_limit


# ---------------------------------------------------------------------------
# Forward wrapper: x (N, Cin, H, W) -> (N, Cout, H, W)
# ---------------------------------------------------------------------------
def ir_model_forward(params, x, *, slope=0.2, io_dtype=None):
    N, Cin, H, W = x.shape
    w1, b1 = params["w1"], params["b1"]   # (Cin, Cin), (Cin,)
    w2, b2 = params["w2"], params["b2"]   # (Cout, Cin), (Cout,)
    Cout = w2.shape[0]
    HW = H * W

    # Pad the spatial axis to a lane multiple only when needed (rare).
    HWp = HW if (HW <= _LANE or HW % _LANE == 0) else pl.cdiv(HW, _LANE) * _LANE
    x3 = x.reshape(N, Cin, HW)
    if HWp != HW:
        x3 = jnp.pad(x3, ((0, 0), (0, 0), (0, HWp - HW)))
    if io_dtype is not None:
        # Optional bf16 I/O halves HBM traffic; relaxes numerics vs the f32 ref.
        x3 = x3.astype(io_dtype)
    out_dtype = x3.dtype

    Bn, t, vmem_limit = _plan_tiles(N, Cin, Cout, HWp, jnp.dtype(out_dtype).itemsize)
    grid = (pl.cdiv(N, Bn), pl.cdiv(HWp, t))

    x_spec = pl.BlockSpec((Bn, Cin, t), lambda b, s: (b, 0, s))
    o_spec = pl.BlockSpec((Bn, Cout, t), lambda b, s: (b, 0, s))

    if Cin * (Cin + Cout) <= _UNROLL_LIMIT:
        kernel = functools.partial(_ir_kernel_unrolled, slope=slope)
        smem = pl.BlockSpec(memory_space=pltpu.MemorySpace.SMEM)
        param_specs = [smem, smem, smem, smem]
        param_args = (w1, b1, w2, b2)
    else:
        kernel = functools.partial(_ir_kernel_mxu, slope=slope)
        param_specs = [
            pl.BlockSpec((Cin, Cin), lambda b, s: (0, 0)),
            pl.BlockSpec((Cin, 1), lambda b, s: (0, 0)),
            pl.BlockSpec((Cout, Cin), lambda b, s: (0, 0)),
            pl.BlockSpec((Cout, 1), lambda b, s: (0, 0)),
        ]
        param_args = (w1, b1.reshape(Cin, 1), w2, b2.reshape(Cout, 1))

    out = pl.pallas_call(
        kernel,
        out_shape=jax.ShapeDtypeStruct((N, Cout, HWp), out_dtype),
        grid=grid,
        in_specs=param_specs + [x_spec],
        out_specs=o_spec,
        compiler_params=pltpu.CompilerParams(
            dimension_semantics=("parallel", "parallel"),
            vmem_limit_bytes=vmem_limit,
        ),
    )(*param_args, x3)

    if HWp != HW:
        out = out[:, :, :HW]
    return out.reshape(N, Cout, H, W)


# ---------------------------------------------------------------------------
# Parameters: matches BaseNetwork.init_weights(init_type='normal', gain=0.02).
# (PyTorch Conv2d 1x1 weights are (O, I, 1, 1); stored here squeezed to (O, I).)
# ---------------------------------------------------------------------------
def init_params(key, in_channels, out_channels, gain=0.02):
    k1, k2 = jax.random.split(key, 2)
    return {
        "w1": gain * jax.random.normal(k1, (in_channels, in_channels), jnp.float32),
        "b1": jnp.zeros((in_channels,), jnp.float32),
        "w2": gain * jax.random.normal(k2, (out_channels, in_channels), jnp.float32),
        "b2": jnp.zeros((out_channels,), jnp.float32),
    }


# Pure-JAX reference (HIGHEST precision so the f32 check is meaningful on TPU).
def _ref_forward(params, x, slope=0.2):
    hp = jax.lax.Precision.HIGHEST
    h = (jnp.einsum("oi,nihw->nohw", params["w1"], x, precision=hp)
         + params["b1"][None, :, None, None])
    h = jnp.where(h >= 0.0, h, slope * h)
    return (jnp.einsum("oi,nihw->nohw", params["w2"], h, precision=hp)
            + params["b2"][None, :, None, None])


# ---------------------------------------------------------------------------
if __name__ == "__main__":
    key = jax.random.PRNGKey(0)
    kp, kx = jax.random.split(key, 2)

    N, Cin, Cout, H, W = 2, 4, 8, 16, 16
    params = init_params(kp, Cin, Cout)
    x = jax.random.normal(kx, (N, Cin, H, W), jnp.float32)

    fwd = jax.jit(ir_model_forward)
    out = jax.block_until_ready(fwd(params, x))

    assert out.shape == (N, Cout, H, W)
    assert out.dtype == jnp.float32

    ref = _ref_forward(params, x)
    assert jnp.allclose(out, ref, atol=1e-5, rtol=1e-5), float(
        jnp.max(jnp.abs(out - ref))
    )

    print("KERNEL_OK")
</pallas_src>

<mosaic_0001>
module attributes {stable_mosaic.version = 11 : i64} {
  func.func @_ir_kernel_unrolled(%arg0: i32, %arg1: i32, %arg2: memref<4x4xf32, #tpu.memory_space<smem>>, %arg3: memref<4xf32, #tpu.memory_space<smem>>, %arg4: memref<8x4xf32, #tpu.memory_space<smem>>, %arg5: memref<8xf32, #tpu.memory_space<smem>>, %arg6: memref<1x4x128xf32, #tpu.memory_space<vmem>>, %arg7: memref<1x8x128xf32, #tpu.memory_space<vmem>>) attributes {dimension_semantics = [#tpu.dimension_semantics<parallel>, #tpu.dimension_semantics<parallel>], iteration_bounds = array<i64: 2, 2>, scalar_prefetch = 0 : i64, scratch_operands = 0 : i64, tpu.core_type = #tpu.core_type<tc>, window_params = [{transform_indices = @transform_0, window_bounds = array<i64: 4, 4>}, {transform_indices = @transform_1, window_bounds = array<i64: 4>}, {transform_indices = @transform_2, window_bounds = array<i64: 8, 4>}, {transform_indices = @transform_3, window_bounds = array<i64: 8>}, {transform_indices = @transform_4, window_bounds = array<i64: 1, 4, 128>}, {transform_indices = @transform_5, window_bounds = array<i64: 1, 8, 128>}]} {
    %c0 = arith.constant 0 : index
    %c0_0 = arith.constant 0 : index
    %c0_1 = arith.constant 0 : index
    %0 = vector.load %arg6[%c0, %c0_0, %c0_1] : memref<1x4x128xf32, #tpu.memory_space<vmem>>, vector<1x4x128xf32>
    %1 = vector.extract_strided_slice %0 {offsets = [0, 0, 0], sizes = [1, 1, 128], strides = [1, 1, 1]} : vector<1x4x128xf32> to vector<1x1x128xf32>
    %2 = vector.shape_cast %1 : vector<1x1x128xf32> to vector<1x128xf32>
    %3 = vector.extract_strided_slice %0 {offsets = [0, 1, 0], sizes = [1, 1, 128], strides = [1, 1, 1]} : vector<1x4x128xf32> to vector<1x1x128xf32>
    %4 = vector.shape_cast %3 : vector<1x1x128xf32> to vector<1x128xf32>
    %5 = vector.extract_strided_slice %0 {offsets = [0, 2, 0], sizes = [1, 1, 128], strides = [1, 1, 1]} : vector<1x4x128xf32> to vector<1x1x128xf32>
    %6 = vector.shape_cast %5 : vector<1x1x128xf32> to vector<1x128xf32>
    %7 = vector.extract_strided_slice %0 {offsets = [0, 3, 0], sizes = [1, 1, 128], strides = [1, 1, 1]} : vector<1x4x128xf32> to vector<1x1x128xf32>
    %8 = vector.shape_cast %7 : vector<1x1x128xf32> to vector<1x128xf32>
    %c0_2 = arith.constant 0 : index
    %c0_3 = arith.constant 0 : index
    %9 = memref.load %arg2[%c0_2, %c0_3] : memref<4x4xf32, #tpu.memory_space<smem>>
    %10 = vector.broadcast %9 : f32 to vector<1x128xf32>
    %11 = arith.mulf %2, %10 : vector<1x128xf32>
    %c0_4 = arith.constant 0 : index
    %c1 = arith.constant 1 : index
    %12 = memref.load %arg2[%c0_4, %c1] : memref<4x4xf32, #tpu.memory_space<smem>>
    %13 = vector.broadcast %12 : f32 to vector<1x128xf32>
    %14 = arith.mulf %4, %13 : vector<1x128xf32>
    %15 = arith.addf %11, %14 : vector<1x128xf32>
    %c0_5 = arith.constant 0 : index
    %c2 = arith.constant 2 : index
    %16 = memref.load %arg2[%c0_5, %c2] : memref<4x4xf32, #tpu.memory_space<smem>>
    %17 = vector.broadcast %16 : f32 to vector<1x128xf32>
    %18 = arith.mulf %6, %17 : vector<1x128xf32>
    %19 = arith.addf %15, %18 : vector<1x128xf32>
    %c0_6 = arith.constant 0 : index
    %c3 = arith.constant 3 : index
    %20 = memref.load %arg2[%c0_6, %c3] : memref<4x4xf32, #tpu.memory_space<smem>>
    %21 = vector.broadcast %20 : f32 to vector<1x128xf32>
    %22 = arith.mulf %8, %21 : vector<1x128xf32>
    %23 = arith.addf %19, %22 : vector<1x128xf32>
    %c0_7 = arith.constant 0 : index
    %24 = memref.load %arg3[%c0_7] : memref<4xf32, #tpu.memory_space<smem>>
    %25 = vector.broadcast %24 : f32 to vector<1x128xf32>
    %26 = arith.addf %23, %25 : vector<1x128xf32>
    %cst = arith.constant 0.000000e+00 : f32
    %27 = vector.broadcast %cst : f32 to vector<1x128xf32>
    %28 = arith.cmpf oge, %26, %27 : vector<1x128xf32>
    %cst_8 = arith.constant 2.000000e-01 : f32
    %29 = vector.broadcast %cst_8 : f32 to vector<1x128xf32>
    %30 = arith.mulf %29, %26 : vector<1x128xf32>
    %31 = arith.select %28, %26, %30 : vector<1x128xi1>, vector<1x128xf32>
    %c1_9 = arith.constant 1 : index
    %c0_10 = arith.constant 0 : index
    %32 = memref.load %arg2[%c1_9, %c0_10] : memref<4x4xf32, #tpu.memory_space<smem>>
    %33 = vector.broadcast %32 : f32 to vector<1x128xf32>
    %34 = arith.mulf %2, %33 : vector<1x128xf32>
    %c1_11 = arith.constant 1 : index
    %c1_12 = arith.constant 1 : index
    %35 = memref.load %arg2[%c1_11, %c1_12] : memref<4x4xf32, #tpu.memory_space<smem>>
    %36 = vector.broadcast %35 : f32 to vector<1x128xf32>
    %37 = arith.mulf %4, %36 : vector<1x128xf32>
    %38 = arith.addf %34, %37 : vector<1x128xf32>
    %c1_13 = arith.constant 1 : index
    %c2_14 = arith.constant 2 : index
    %39 = memref.load %arg2[%c1_13, %c2_14] : memref<4x4xf32, #tpu.memory_space<smem>>
    %40 = vector.broadcast %39 : f32 to vector<1x128xf32>
    %41 = arith.mulf %6, %40 : vector<1x128xf32>
    %42 = arith.addf %38, %41 : vector<1x128xf32>
    %c1_15 = arith.constant 1 : index
    %c3_16 = arith.constant 3 : index
    %43 = memref.load %arg2[%c1_15, %c3_16] : memref<4x4xf32, #tpu.memory_space<smem>>
    %44 = vector.broadcast %43 : f32 to vector<1x128xf32>
    %45 = arith.mulf %8, %44 : vector<1x128xf32>
    %46 = arith.addf %42, %45 : vector<1x128xf32>
    %c1_17 = arith.constant 1 : index
    %47 = memref.load %arg3[%c1_17] : memref<4xf32, #tpu.memory_space<smem>>
    %48 = vector.broadcast %47 : f32 to vector<1x128xf32>
    %49 = arith.addf %46, %48 : vector<1x128xf32>
    %cst_18 = arith.constant 0.000000e+00 : f32
    %50 = vector.broadcast %cst_18 : f32 to vector<1x128xf32>
    %51 = arith.cmpf oge, %49, %50 : vector<1x128xf32>
    %cst_19 = arith.constant 2.000000e-01 : f32
    %52 = vector.broadcast %cst_19 : f32 to vector<1x128xf32>
    %53 = arith.mulf %52, %49 : vector<1x128xf32>
    %54 = arith.select %51, %49, %53 : vector<1x128xi1>, vector<1x128xf32>
    %c2_20 = arith.constant 2 : index
    %c0_21 = arith.constant 0 : index
    %55 = memref.load %arg2[%c2_20, %c0_21] : memref<4x4xf32, #tpu.memory_space<smem>>
    %56 = vector.broadcast %55 : f32 to vector<1x128xf32>
    %57 = arith.mulf %2, %56 : vector<1x128xf32>
    %c2_22 = arith.constant 2 : index
    %c1_23 = arith.constant 1 : index
    %58 = memref.load %arg2[%c2_22, %c1_23] : memref<4x4xf32, #tpu.memory_space<smem>>
    %59 = vector.broadcast %58 : f32 to vector<1x128xf32>
    %60 = arith.mulf %4, %59 : vector<1x128xf32>
    %61 = arith.addf %57, %60 : vector<1x128xf32>
    %c2_24 = arith.constant 2 : index
    %c2_25 = arith.constant 2 : index
    %62 = memref.load %arg2[%c2_24, %c2_25] : memref<4x4xf32, #tpu.memory_space<smem>>
    %63 = vector.broadcast %62 : f32 to vector<1x128xf32>
    %64 = arith.mulf %6, %63 : vector<1x128xf32>
    %65 = arith.addf %61, %64 : vector<1x128xf32>
    %c2_26 = arith.constant 2 : index
    %c3_27 = arith.constant 3 : index
    %66 = memref.load %arg2[%c2_26, %c3_27] : memref<4x4xf32, #tpu.memory_space<smem>>
    %67 = vector.broadcast %66 : f32 to vector<1x128xf32>
    %68 = arith.mulf %8, %67 : vector<1x128xf32>
    %69 = arith.addf %65, %68 : vector<1x128xf32>
    %c2_28 = arith.constant 2 : index
    %70 = memref.load %arg3[%c2_28] : memref<4xf32, #tpu.memory_space<smem>>
    %71 = vector.broadcast %70 : f32 to vector<1x128xf32>
    %72 = arith.addf %69, %71 : vector<1x128xf32>
    %cst_29 = arith.constant 0.000000e+00 : f32
    %73 = vector.broadcast %cst_29 : f32 to vector<1x128xf32>
    %74 = arith.cmpf oge, %72, %73 : vector<1x128xf32>
    %cst_30 = arith.constant 2.000000e-01 : f32
    %75 = vector.broadcast %cst_30 : f32 to vector<1x128xf32>
    %76 = arith.mulf %75, %72 : vector<1x128xf32>
    %77 = arith.select %74, %72, %76 : vector<1x128xi1>, vector<1x128xf32>
    %c3_31 = arith.constant 3 : index
    %c0_32 = arith.constant 0 : index
    %78 = memref.load %arg2[%c3_31, %c0_32] : memref<4x4xf32, #tpu.memory_space<smem>>
    %79 = vector.broadcast %78 : f32 to vector<1x128xf32>
    %80 = arith.mulf %2, %79 : vector<1x128xf32>
    %c3_33 = arith.constant 3 : index
    %c1_34 = arith.constant 1 : index
    %81 = memref.load %arg2[%c3_33, %c1_34] : memref<4x4xf32, #tpu.memory_space<smem>>
    %82 = vector.broadcast %81 : f32 to vector<1x128xf32>
    %83 = arith.mulf %4, %82 : vector<1x128xf32>
    %84 = arith.addf %80, %83 : vector<1x128xf32>
    %c3_35 = arith.constant 3 : index
    %c2_36 = arith.constant 2 : index
    %85 = memref.load %arg2[%c3_35, %c2_36] : memref<4x4xf32, #tpu.memory_space<smem>>
    %86 = vector.broadcast %85 : f32 to vector<1x128xf32>
    %87 = arith.mulf %6, %86 : vector<1x128xf32>
    %88 = arith.addf %84, %87 : vector<1x128xf32>
    %c3_37 = arith.constant 3 : index
    %c3_38 = arith.constant 3 : index
    %89 = memref.load %arg2[%c3_37, %c3_38] : memref<4x4xf32, #tpu.memory_space<smem>>
    %90 = vector.broadcast %89 : f32 to vector<1x128xf32>
    %91 = arith.mulf %8, %90 : vector<1x128xf32>
    %92 = arith.addf %88, %91 : vector<1x128xf32>
    %c3_39 = arith.constant 3 : index
    %93 = memref.load %arg3[%c3_39] : memref<4xf32, #tpu.memory_space<smem>>
    %94 = vector.broadcast %93 : f32 to vector<1x128xf32>
    %95 = arith.addf %92, %94 : vector<1x128xf32>
    %cst_40 = arith.constant 0.000000e+00 : f32
    %96 = vector.broadcast %cst_40 : f32 to vector<1x128xf32>
    %97 = arith.cmpf oge, %95, %96 : vector<1x128xf32>
    %cst_41 = arith.constant 2.000000e-01 : f32
    %98 = vector.broadcast %cst_41 : f32 to vector<1x128xf32>
    %99 = arith.mulf %98, %95 : vector<1x128xf32>
    %100 = arith.select %97, %95, %99 : vector<1x128xi1>, vector<1x128xf32>
    %c0_42 = arith.constant 0 : index
    %c0_43 = arith.constant 0 : index
    %101 = memref.load %arg4[%c0_42, %c0_43] : memref<8x4xf32, #tpu.memory_space<smem>>
    %102 = vector.broadcast %101 : f32 to vector<1x128xf32>
    %103 = arith.mulf %31, %102 : vector<1x128xf32>
    %c0_44 = arith.constant 0 : index
    %c1_45 = arith.constant 1 : index
    %104 = memref.load %arg4[%c0_44, %c1_45] : memref<8x4xf32, #tpu.memory_space<smem>>
    %105 = vector.broadcast %104 : f32 to vector<1x128xf32>
    %106 = arith.mulf %54, %105 : vector<1x128xf32>
    %107 = arith.addf %103, %106 : vector<1x128xf32>
    %c0_46 = arith.constant 0 : index
    %c2_47 = arith.constant 2 : index
    %108 = memref.load %arg4[%c0_46, %c2_47] : memref<8x4xf32, #tpu.memory_space<smem>>
    %109 = vector.broadcast %108 : f32 to vector<1x128xf32>
    %110 = arith.mulf %77, %109 : vector<1x128xf32>
    %111 = arith.addf %107, %110 : vector<1x128xf32>
    %c0_48 = arith.constant 0 : index
    %c3_49 = arith.constant 3 : index
    %112 = memref.load %arg4[%c0_48, %c3_49] : memref<8x4xf32, #tpu.memory_space<smem>>
    %113 = vector.broadcast %112 : f32 to vector<1x128xf32>
    %114 = arith.mulf %100, %113 : vector<1x128xf32>
    %115 = arith.addf %111, %114 : vector<1x128xf32>
    %c0_50 = arith.constant 0 : index
    %116 = memref.load %arg5[%c0_50] : memref<8xf32, #tpu.memory_space<smem>>
    %117 = vector.broadcast %116 : f32 to vector<1x128xf32>
    %118 = arith.addf %115, %117 : vector<1x128xf32>
    %c1_51 = arith.constant 1 : index
    %c0_52 = arith.constant 0 : index
    %119 = memref.load %arg4[%c1_51, %c0_52] : memref<8x4xf32, #tpu.memory_space<smem>>
    %120 = vector.broadcast %119 : f32 to vector<1x128xf32>
    %121 = arith.mulf %31, %120 : vector<1x128xf32>
    %c1_53 = arith.constant 1 : index
    %c1_54 = arith.constant 1 : index
    %122 = memref.load %arg4[%c1_53, %c1_54] : memref<8x4xf32, #tpu.memory_space<smem>>
    %123 = vector.broadcast %122 : f32 to vector<1x128xf32>
    %124 = arith.mulf %54, %123 : vector<1x128xf32>
    %125 = arith.addf %121, %124 : vector<1x128xf32>
    %c1_55 = arith.constant 1 : index
    %c2_56 = arith.constant 2 : index
    %126 = memref.load %arg4[%c1_55, %c2_56] : memref<8x4xf32, #tpu.memory_space<smem>>
    %127 = vector.broadcast %126 : f32 to vector<1x128xf32>
    %128 = arith.mulf %77, %127 : vector<1x128xf32>
    %129 = arith.addf %125, %128 : vector<1x128xf32>
    %c1_57 = arith.constant 1 : index
    %c3_58 = arith.constant 3 : index
    %130 = memref.load %arg4[%c1_57, %c3_58] : memref<8x4xf32, #tpu.memory_space<smem>>
    %131 = vector.broadcast %130 : f32 to vector<1x128xf32>
    %132 = arith.mulf %100, %131 : vector<1x128xf32>
    %133 = arith.addf %129, %132 : vector<1x128xf32>
    %c1_59 = arith.constant 1 : index
    %134 = memref.load %arg5[%c1_59] : memref<8xf32, #tpu.memory_space<smem>>
    %135 = vector.broadcast %134 : f32 to vector<1x128xf32>
    %136 = arith.addf %133, %135 : vector<1x128xf32>
    %c2_60 = arith.constant 2 : index
    %c0_61 = arith.constant 0 : index
    %137 = memref.load %arg4[%c2_60, %c0_61] : memref<8x4xf32, #tpu.memory_space<smem>>
    %138 = vector.broadcast %137 : f32 to vector<1x128xf32>
    %139 = arith.mulf %31, %138 : vector<1x128xf32>
    %c2_62 = arith.constant 2 : index
    %c1_63 = arith.constant 1 : index
    %140 = memref.load %arg4[%c2_62, %c1_63] : memref<8x4xf32, #tpu.memory_space<smem>>
    %141 = vector.broadcast %140 : f32 to vector<1x128xf32>
    %142 = arith.mulf %54, %141 : vector<1x128xf32>
    %143 = arith.addf %139, %142 : vector<1x128xf32>
    %c2_64 = arith.constant 2 : index
    %c2_65 = arith.constant 2 : index
    %144 = memref.load %arg4[%c2_64, %c2_65] : memref<8x4xf32, #tpu.memory_space<smem>>
    %145 = vector.broadcast %144 : f32 to vector<1x128xf32>
    %146 = arith.mulf %77, %145 : vector<1x128xf32>
    %147 = arith.addf %143, %146 : vector<1x128xf32>
    %c2_66 = arith.constant 2 : index
    %c3_67 = arith.constant 3 : index
    %148 = memref.load %arg4[%c2_66, %c3_67] : memref<8x4xf32, #tpu.memory_space<smem>>
    %149 = vector.broadcast %148 : f32 to vector<1x128xf32>
    %150 = arith.mulf %100, %149 : vector<1x128xf32>
    %151 = arith.addf %147, %150 : vector<1x128xf32>
    %c2_68 = arith.constant 2 : index
    %152 = memref.load %arg5[%c2_68] : memref<8xf32, #tpu.memory_space<smem>>
    %153 = vector.broadcast %152 : f32 to vector<1x128xf32>
    %154 = arith.addf %151, %153 : vector<1x128xf32>
    %c3_69 = arith.constant 3 : index
    %c0_70 = arith.constant 0 : index
    %155 = memref.load %arg4[%c3_69, %c0_70] : memref<8x4xf32, #tpu.memory_space<smem>>
    %156 = vector.broadcast %155 : f32 to vector<1x128xf32>
    %157 = arith.mulf %31, %156 : vector<1x128xf32>
    %c3_71 = arith.constant 3 : index
    %c1_72 = arith.constant 1 : index
    %158 = memref.load %arg4[%c3_71, %c1_72] : memref<8x4xf32, #tpu.memory_space<smem>>
    %159 = vector.broadcast %158 : f32 to vector<1x128xf32>
    %160 = arith.mulf %54, %159 : vector<1x128xf32>
    %161 = arith.addf %157, %160 : vector<1x128xf32>
    %c3_73 = arith.constant 3 : index
    %c2_74 = arith.constant 2 : index
    %162 = memref.load %arg4[%c3_73, %c2_74] : memref<8x4xf32, #tpu.memory_space<smem>>
    %163 = vector.broadcast %162 : f32 to vector<1x128xf32>
    %164 = arith.mulf %77, %163 : vector<1x128xf32>
    %165 = arith.addf %161, %164 : vector<1x128xf32>
    %c3_75 = arith.constant 3 : index
    %c3_76 = arith.constant 3 : index
    %166 = memref.load %arg4[%c3_75, %c3_76] : memref<8x4xf32, #tpu.memory_space<smem>>
    %167 = vector.broadcast %166 : f32 to vector<1x128xf32>
    %168 = arith.mulf %100, %167 : vector<1x128xf32>
    %169 = arith.addf %165, %168 : vector<1x128xf32>
    %c3_77 = arith.constant 3 : index
    %170 = memref.load %arg5[%c3_77] : memref<8xf32, #tpu.memory_space<smem>>
    %171 = vector.broadcast %170 : f32 to vector<1x128xf32>
    %172 = arith.addf %169, %171 : vector<1x128xf32>
    %c4 = arith.constant 4 : index
    %c0_78 = arith.constant 0 : index
    %173 = memref.load %arg4[%c4, %c0_78] : memref<8x4xf32, #tpu.memory_space<smem>>
    %174 = vector.broadcast %173 : f32 to vector<1x128xf32>
    %175 = arith.mulf %31, %174 : vector<1x128xf32>
    %c4_79 = arith.constant 4 : index
    %c1_80 = arith.constant 1 : index
    %176 = memref.load %arg4[%c4_79, %c1_80] : memref<8x4xf32, #tpu.memory_space<smem>>
    %177 = vector.broadcast %176 : f32 to vector<1x128xf32>
    %178 = arith.mulf %54, %177 : vector<1x128xf32>
    %179 = arith.addf %175, %178 : vector<1x128xf32>
    %c4_81 = arith.constant 4 : index
    %c2_82 = arith.constant 2 : index
    %180 = memref.load %arg4[%c4_81, %c2_82] : memref<8x4xf32, #tpu.memory_space<smem>>
    %181 = vector.broadcast %180 : f32 to vector<1x128xf32>
    %182 = arith.mulf %77, %181 : vector<1x128xf32>
    %183 = arith.addf %179, %182 : vector<1x128xf32>
    %c4_83 = arith.constant 4 : index
    %c3_84 = arith.constant 3 : index
    %184 = memref.load %arg4[%c4_83, %c3_84] : memref<8x4xf32, #tpu.memory_space<smem>>
    %185 = vector.broadcast %184 : f32 to vector<1x128xf32>
    %186 = arith.mulf %100, %185 : vector<1x128xf32>
    %187 = arith.addf %183, %186 : vector<1x128xf32>
    %c4_85 = arith.constant 4 : index
    %188 = memref.load %arg5[%c4_85] : memref<8xf32, #tpu.memory_space<smem>>
    %189 = vector.broadcast %188 : f32 to vector<1x128xf32>
    %190 = arith.addf %187, %189 : vector<1x128xf32>
    %c5 = arith.constant 5 : index
    %c0_86 = arith.constant 0 : index
    %191 = memref.load %arg4[%c5, %c0_86] : memref<8x4xf32, #tpu.memory_space<smem>>
    %192 = vector.broadcast %191 : f32 to vector<1x128xf32>
    %193 = arith.mulf %31, %192 : vector<1x128xf32>
    %c5_87 = arith.constant 5 : index
    %c1_88 = arith.constant 1 : index
    %194 = memref.load %arg4[%c5_87, %c1_88] : memref<8x4xf32, #tpu.memory_space<smem>>
    %195 = vector.broadcast %194 : f32 to vector<1x128xf32>
    %196 = arith.mulf %54, %195 : vector<1x128xf32>
    %197 = arith.addf %193, %196 : vector<1x128xf32>
    %c5_89 = arith.constant 5 : index
    %c2_90 = arith.constant 2 : index
    %198 = memref.load %arg4[%c5_89, %c2_90] : memref<8x4xf32, #tpu.memory_space<smem>>
    %199 = vector.broadcast %198 : f32 to vector<1x128xf32>
    %200 = arith.mulf %77, %199 : vector<1x128xf32>
    %201 = arith.addf %197, %200 : vector<1x128xf32>
    %c5_91 = arith.constant 5 : index
    %c3_92 = arith.constant 3 : index
    %202 = memref.load %arg4[%c5_91, %c3_92] : memref<8x4xf32, #tpu.memory_space<smem>>
    %203 = vector.broadcast %202 : f32 to vector<1x128xf32>
    %204 = arith.mulf %100, %203 : vector<1x128xf32>
    %205 = arith.addf %201, %204 : vector<1x128xf32>
    %c5_93 = arith.constant 5 : index
    %206 = memref.load %arg5[%c5_93] : memref<8xf32, #tpu.memory_space<smem>>
    %207 = vector.broadcast %206 : f32 to vector<1x128xf32>
    %208 = arith.addf %205, %207 : vector<1x128xf32>
    %c6 = arith.constant 6 : index
    %c0_94 = arith.constant 0 : index
    %209 = memref.load %arg4[%c6, %c0_94] : memref<8x4xf32, #tpu.memory_space<smem>>
    %210 = vector.broadcast %209 : f32 to vector<1x128xf32>
    %211 = arith.mulf %31, %210 : vector<1x128xf32>
    %c6_95 = arith.constant 6 : index
    %c1_96 = arith.constant 1 : index
    %212 = memref.load %arg4[%c6_95, %c1_96] : memref<8x4xf32, #tpu.memory_space<smem>>
    %213 = vector.broadcast %212 : f32 to vector<1x128xf32>
    %214 = arith.mulf %54, %213 : vector<1x128xf32>
    %215 = arith.addf %211, %214 : vector<1x128xf32>
    %c6_97 = arith.constant 6 : index
    %c2_98 = arith.constant 2 : index
    %216 = memref.load %arg4[%c6_97, %c2_98] : memref<8x4xf32, #tpu.memory_space<smem>>
    %217 = vector.broadcast %216 : f32 to vector<1x128xf32>
    %218 = arith.mulf %77, %217 : vector<1x128xf32>
    %219 = arith.addf %215, %218 : vector<1x128xf32>
    %c6_99 = arith.constant 6 : index
    %c3_100 = arith.constant 3 : index
    %220 = memref.load %arg4[%c6_99, %c3_100] : memref<8x4xf32, #tpu.memory_space<smem>>
    %221 = vector.broadcast %220 : f32 to vector<1x128xf32>
    %222 = arith.mulf %100, %221 : vector<1x128xf32>
    %223 = arith.addf %219, %222 : vector<1x128xf32>
    %c6_101 = arith.constant 6 : index
    %224 = memref.load %arg5[%c6_101] : memref<8xf32, #tpu.memory_space<smem>>
    %225 = vector.broadcast %224 : f32 to vector<1x128xf32>
    %226 = arith.addf %223, %225 : vector<1x128xf32>
    %c7 = arith.constant 7 : index
    %c0_102 = arith.constant 0 : index
    %227 = memref.load %arg4[%c7, %c0_102] : memref<8x4xf32, #tpu.memory_space<smem>>
    %228 = vector.broadcast %227 : f32 to vector<1x128xf32>
    %229 = arith.mulf %31, %228 : vector<1x128xf32>
    %c7_103 = arith.constant 7 : index
    %c1_104 = arith.constant 1 : index
    %230 = memref.load %arg4[%c7_103, %c1_104] : memref<8x4xf32, #tpu.memory_space<smem>>
    %231 = vector.broadcast %230 : f32 to vector<1x128xf32>
    %232 = arith.mulf %54, %231 : vector<1x128xf32>
    %233 = arith.addf %229, %232 : vector<1x128xf32>
    %c7_105 = arith.constant 7 : index
    %c2_106 = arith.constant 2 : index
    %234 = memref.load %arg4[%c7_105, %c2_106] : memref<8x4xf32, #tpu.memory_space<smem>>
    %235 = vector.broadcast %234 : f32 to vector<1x128xf32>
    %236 = arith.mulf %77, %235 : vector<1x128xf32>
    %237 = arith.addf %233, %236 : vector<1x128xf32>
    %c7_107 = arith.constant 7 : index
    %c3_108 = arith.constant 3 : index
    %238 = memref.load %arg4[%c7_107, %c3_108] : memref<8x4xf32, #tpu.memory_space<smem>>
    %239 = vector.broadcast %238 : f32 to vector<1x128xf32>
    %240 = arith.mulf %100, %239 : vector<1x128xf32>
    %241 = arith.addf %237, %240 : vector<1x128xf32>
    %c7_109 = arith.constant 7 : index
    %242 = memref.load %arg5[%c7_109] : memref<8xf32, #tpu.memory_space<smem>>
    %243 = vector.broadcast %242 : f32 to vector<1x128xf32>
    %244 = arith.addf %241, %243 : vector<1x128xf32>
    %245 = vector.shape_cast %118 : vector<1x128xf32> to vector<1x1x128xf32>
    %246 = vector.shape_cast %136 : vector<1x128xf32> to vector<1x1x128xf32>
    %247 = vector.shape_cast %154 : vector<1x128xf32> to vector<1x1x128xf32>
    %248 = vector.shape_cast %172 : vector<1x128xf32> to vector<1x1x128xf32>
    %249 = vector.shape_cast %190 : vector<1x128xf32> to vector<1x1x128xf32>
    %250 = vector.shape_cast %208 : vector<1x128xf32> to vector<1x1x128xf32>
    %251 = vector.shape_cast %226 : vector<1x128xf32> to vector<1x1x128xf32>
    %252 = vector.shape_cast %244 : vector<1x128xf32> to vector<1x1x128xf32>
    %253 = tpu.concatenate %245, %246, %247, %248, %249, %250, %251, %252 in 1 : vector<1x1x128xf32>, vector<1x1x128xf32>, vector<1x1x128xf32>, vector<1x1x128xf32>, vector<1x1x128xf32>, vector<1x1x128xf32>, vector<1x1x128xf32>, vector<1x1x128xf32> -> vector<1x8x128xf32>
    %c0_110 = arith.constant 0 : index
    %c0_111 = arith.constant 0 : index
    %c0_112 = arith.constant 0 : index
    %254 = vector.load %arg7[%c0_110, %c0_111, %c0_112] : memref<1x8x128xf32, #tpu.memory_space<vmem>>, vector<1x8x128xf32>
    tpu.vector_store %arg7[%c0_110, %c0_111, %c0_112], %253 {strides = array<i32>} : memref<1x8x128xf32, #tpu.memory_space<vmem>>, vector<1x8x128xf32>,
    return
  }
  func.func @transform_0(%arg0: i32, %arg1: i32) -> (i32, i32) {
    %c0_i32 = arith.constant 0 : i32
    %c0_i32_0 = arith.constant 0 : i32
    %c0_i32_1 = arith.constant 0 : i32
    return %c0_i32, %c0_i32_0 : i32, i32
  }
  func.func @transform_1(%arg0: i32, %arg1: i32) -> i32 {
    %c0_i32 = arith.constant 0 : i32
    %c0_i32_0 = arith.constant 0 : i32
    return %c0_i32 : i32
  }
  func.func @transform_2(%arg0: i32, %arg1: i32) -> (i32, i32) {
    %c0_i32 = arith.constant 0 : i32
    %c0_i32_0 = arith.constant 0 : i32
    %c0_i32_1 = arith.constant 0 : i32
    return %c0_i32, %c0_i32_0 : i32, i32
  }
  func.func @transform_3(%arg0: i32, %arg1: i32) -> i32 {
    %c0_i32 = arith.constant 0 : i32
    %c0_i32_0 = arith.constant 0 : i32
    return %c0_i32 : i32
  }
  func.func @transform_4(%arg0: i32, %arg1: i32) -> (i32, i32, i32) {
    %c0_i32 = arith.constant 0 : i32
    %c0_i32_0 = arith.constant 0 : i32
    return %arg0, %c0_i32, %arg1 : i32, i32, i32
  }
  func.func @transform_5(%arg0: i32, %arg1: i32) -> (i32, i32, i32) {
    %c0_i32 = arith.constant 0 : i32
    %c0_i32_0 = arith.constant 0 : i32
    return %arg0, %c0_i32, %arg1 : i32, i32, i32
  }
}

</mosaic_0001>

<llo_original>
// kernel: ir_model_forward.1
$region0: #{ir_model_forward.1}
  #allocation0 [shape = 'u32[]', space=smem, size = 0x4, offset = 0x4, fixed_abs, tag = 'smem constant byte address 0x4 - core index']
  #allocation1 [shape = 'u32[144,128]{1,0:T(1,128)}', space=vmem, size = 0x12000, scoped, tag = 'internal scratch']
  %s0 = inlined_call_operand.vmem [shape: f32[4,4], index: 0, kind: input, shape index: {}]
  %s1 = inlined_call_operand.vmem [shape: f32[4], index: 1, kind: input, shape index: {}]
  %s2 = inlined_call_operand.vmem [shape: f32[8,4], index: 2, kind: input, shape index: {}]
  %s3 = inlined_call_operand.vmem [shape: f32[8], index: 3, kind: input, shape index: {}]
  %s4 = inlined_call_operand.vmem [shape: f32[2,4,256], index: 4, kind: input, shape index: {}]
  %s5 = inlined_call_operand.vmem [shape: f32[2,8,256], index: 5, kind: output, shape index: {}]
  %s6 = sld [smem:[#allocation0]]
  $region69: #{ir_model_forward.1} parent=0
    _
  %s8 = ssub.s32 1, %s6
  %s9 = scalar_select 0, %s8, %s6
  $region1: #{ir_model_forward.1} parent=0
    #allocation2 [shape = 'u8[2048]{0}', space=smem, size = 0x800, scoped, tag = 'input window, operand 0, single buffered']
    #allocation3 [shape = 's32[2]{0}', space=sflag, size = 0x8, scoped, tag = 'scoped memory for ir_model_forward.1']
    #allocation4 [shape = 'u8[512]{0}', space=smem, size = 0x200, scoped, tag = 'input window, operand 1, single buffered']
    #allocation5 [shape = 's32[1]{0}', space=sflag, size = 0x4, scoped, tag = 'scoped memory for ir_model_forward.1']
    #allocation6 [shape = 'u8[4096]{0}', space=smem, size = 0x1000, scoped, tag = 'input window, operand 2, single buffered']
    #allocation7 [shape = 'u8[512]{0}', space=smem, size = 0x200, scoped, tag = 'input window, operand 3, single buffered']
    #allocation8 [shape = 's32[1]{0}', space=sflag, size = 0x4, scoped, tag = 'scoped memory for ir_model_forward.1']
    %10 = vsyncpa [#allocation3], 0
    %11 = vsyncpa [#allocation5], 0
    %12 = vsyncpa [#allocation8], 0
    loop: start=0, step=1, limit=6
    $region2: #{ir_model_forward.1} parent=1 // loop_pre_header
      _
    $region3: #{ir_model_forward.1} parent=1 // loop_header
      %s14 = sphi 0, %s18
      %p15 = scmp.ge.s32.totalorder %s14, 6
      %s21 = sphi 0, %s33
      %s22 = sphi 0, %s29
      %s23 = sphi 0, %s21
      %s24 = sphi 0, %s22
      %s25 = sphi 0, %s23
      %s26 = sphi 0, %s24
      %s34 = sphi 0, %s34
      %s36 = sphi 0, %s34
      %s37 = sphi 0, %s36
      %s51 = sphi 0, %s37
      %s55 = sphi 0, %s55
      %s57 = sphi 0, %s55
      %s58 = sphi 0, %s57
      %s72 = sphi 0, %s58
      %s76 = sphi 0, %s76
      %s78 = sphi 0, %s76
      %s79 = sphi 0, %s78
      %s93 = sphi 0, %s79
      %s97 = sphi 0, %s97
      %s99 = sphi 0, %s97
      %s100 = sphi 0, %s99
      %s114 = sphi 0, %s100
      %s122 = sphi 0, %s124
      %s125 = sphi 0, %s122
      %s126 = sphi 0, %s125
      %s142 = sphi 0, %s126
      %s150 = sphi 0, %s152
      %s153 = sphi 0, %s150
      %s154 = sphi 0, %s153
      %s170 = sphi 0, %s154
    $region4: #{ir_model_forward.1} parent=1 // loop_header_branch
      %17 = sbr.rel (%p15) target = $region8
    $region5: #{ir_model_forward.1} parent=1 // loop_body
      %s19 = ssub.s32 %s14, 1
      %s20 = ssub.s32 %s14, 2
      %s27 = sadd.s32 1, %s22
      %p28 = scmp.ge.s32.totalorder %s27, 2
      %s29 = scalar_select %p28, 0, %s27
      %s30 = sadd.s32 1, %s21
      %s31 = scalar_select %p28, %s30, %s21
      %p32 = scmp.ge.s32.totalorder %s31, 2
      %s33 = scalar_select %p32, 0, %s31
      %s35 = sadd.s32 %s34, 1
      %p38 = scmp.eq.s32.totalorder %s14, 3
      %p39 = scmp.ne.s32.totalorder %s34, %s36
      %p40 = scmp.eq.s32.totalorder %s14, 0
      %p41 = por %p39, %p40
      %p42 = scmp.ne.s32.totalorder %s34, %s36
      %p43 = scmp.eq.s32.totalorder %s19, 3
      %p44 = por %p42, %p43
      %p45 = scmp.ne.s32.totalorder %s36, %s37
      %p46 = scmp.eq.s32.totalorder %s19, 0
      %p47 = por %p45, %p46
      %p48 = scmp.ne.s32.totalorder %s36, %s37
      %p49 = scmp.eq.s32.totalorder %s20, 3
      %p50 = por %p48, %p49
      %p52 = scmp.ne.s32.totalorder %s37, %s51
      %p53 = scmp.eq.s32.totalorder %s20, 0
      %p54 = por %p52, %p53
      %s56 = sadd.s32 %s55, 1
      %p59 = scmp.eq.s32.totalorder %s14, 3
      %p60 = scmp.ne.s32.totalorder %s55, %s57
      %p61 = scmp.eq.s32.totalorder %s14, 0
      %p62 = por %p60, %p61
      %p63 = scmp.ne.s32.totalorder %s55, %s57
      %p64 = scmp.eq.s32.totalorder %s19, 3
      %p65 = por %p63, %p64
      %p66 = scmp.ne.s32.totalorder %s57, %s58
      %p67 = scmp.eq.s32.totalorder %s19, 0
      %p68 = por %p66, %p67
      %p69 = scmp.ne.s32.totalorder %s57, %s58
      %p70 = scmp.eq.s32.totalorder %s20, 3
      %p71 = por %p69, %p70
      %p73 = scmp.ne.s32.totalorder %s58, %s72
      %p74 = scmp.eq.s32.totalorder %s20, 0
      %p75 = por %p73, %p74
      %s77 = sadd.s32 %s76, 1
      %p80 = scmp.eq.s32.totalorder %s14, 3
      %p81 = scmp.ne.s32.totalorder %s76, %s78
      %p82 = scmp.eq.s32.totalorder %s14, 0
      %p83 = por %p81, %p82
      %p84 = scmp.ne.s32.totalorder %s76, %s78
      %p85 = scmp.eq.s32.totalorder %s19, 3
      %p86 = por %p84, %p85
      %p87 = scmp.ne.s32.totalorder %s78, %s79
      %p88 = scmp.eq.s32.totalorder %s19, 0
      %p89 = por %p87, %p88
      %p90 = scmp.ne.s32.totalorder %s78, %s79
      %p91 = scmp.eq.s32.totalorder %s20, 3
      %p92 = por %p90, %p91
      %p94 = scmp.ne.s32.totalorder %s79, %s93
      %p95 = scmp.eq.s32.totalorder %s20, 0
      %p96 = por %p94, %p95
      %s98 = sadd.s32 %s97, 1
      %p101 = scmp.eq.s32.totalorder %s14, 3
      %p102 = scmp.ne.s32.totalorder %s97, %s99
      %p103 = scmp.eq.s32.totalorder %s14, 0
      %p104 = por %p102, %p103
      %p105 = scmp.ne.s32.totalorder %s97, %s99
      %p106 = scmp.eq.s32.totalorder %s19, 3
      %p107 = por %p105, %p106
      %p108 = scmp.ne.s32.totalorder %s99, %s100
      %p109 = scmp.eq.s32.totalorder %s19, 0
      %p110 = por %p108, %p109
      %p111 = scmp.ne.s32.totalorder %s99, %s100
      %p112 = scmp.eq.s32.totalorder %s20, 3
      %p113 = por %p111, %p112
      %p115 = scmp.ne.s32.totalorder %s100, %s114
      %p116 = scmp.eq.s32.totalorder %s20, 0
      %p117 = por %p115, %p116
      %s118 = ssub.s32 %s21, %s33
      %s119 = ssub.s32 %s22, %s29
      %s120 = sor.u32 %s118, %s119
      %p121 = scmp.eq.s32.totalorder %s120, 0
      %s123 = sadd.s32 %s122, 1
      %s124 = scalar_select %p121, %s122, %s123
      %p127 = pneg %p121
      %p128 = scmp.eq.s32.totalorder %s14, 3
      %p129 = por %p127, %p128
      %p130 = scmp.ne.s32.totalorder %s122, %s125
      %p131 = scmp.eq.s32.totalorder %s14, 0
      %p132 = por %p130, %p131
      %p133 = scmp.ne.s32.totalorder %s122, %s125
      %p134 = scmp.eq.s32.totalorder %s19, 3
      %p135 = por %p133, %p134
      %p136 = scmp.ne.s32.totalorder %s125, %s126
      %p137 = scmp.eq.s32.totalorder %s19, 0
      %p138 = por %p136, %p137
      %p139 = scmp.ne.s32.totalorder %s125, %s126
      %p140 = scmp.eq.s32.totalorder %s20, 3
      %p141 = por %p139, %p140
      %p143 = scmp.ne.s32.totalorder %s126, %s142
      %p144 = scmp.eq.s32.totalorder %s20, 0
      %p145 = por %p143, %p144
      %s146 = ssub.s32 %s21, %s33
      %s147 = ssub.s32 %s22, %s29
      %s148 = sor.u32 %s146, %s147
      %p149 = scmp.eq.s32.totalorder %s148, 0
      %s151 = sadd.s32 %s150, 1
      %s152 = scalar_select %p149, %s150, %s151
      %p155 = pneg %p149
      %p156 = scmp.eq.s32.totalorder %s14, 3
      %p157 = por %p155, %p156
      %p158 = scmp.ne.s32.totalorder %s150, %s153
      %p159 = scmp.eq.s32.totalorder %s14, 0
      %p160 = por %p158, %p159
      %p161 = scmp.ne.s32.totalorder %s150, %s153
      %p162 = scmp.eq.s32.totalorder %s19, 3
      %p163 = por %p161, %p162
      %p164 = scmp.ne.s32.totalorder %s153, %s154
      %p165 = scmp.eq.s32.totalorder %s19, 0
      %p166 = por %p164, %p165
      %p167 = scmp.ne.s32.totalorder %s153, %s154
      %p168 = scmp.eq.s32.totalorder %s20, 3
      %p169 = por %p167, %p168
      %p171 = scmp.ne.s32.totalorder %s154, %s170
      %p172 = scmp.eq.s32.totalorder %s20, 0
      %p173 = por %p171, %p172
      %p174 = scmp.le.s32.totalorder 1, %s14
      %p175 = scmp.lt.s32.totalorder %s14, 5
      %p176 = pnand %p174, %p175
      %p177 = pneg %p176
      // Predicated region
      $region9: #{ir_model_forward.1} parent=5 // pred_check
        _
      $region10: #{ir_model_forward.1} parent=5 // pred_check_branch
        %179 = sbr.rel (%p176) target = $region12
      $region11: #{ir_model_forward.1} parent=5 // pred_region
        %s180 = ssub.s32 %s14, 1
        // Predicated region
        $region13: #{ir_model_forward.1} parent=11 // pred_check
          %p181 = pneg %p47
        $region14: #{ir_model_forward.1} parent=11 // pred_check_branch
          %183 = sbr.rel (%p181) target = $region16
        $region15: #{ir_model_forward.1} parent=11 // pred_region
          %s185 = ssub.s32 64, 64
          %186 = vsyncadd [#allocation3], %s185
          %s188 = sshll.u32 %s0, 4
          %s189 = int_to_ptr.vmem [resolvable:$true] %s188
          %191 = dma.vmem_to_smem %s189, 64, [#allocation2], [#allocation3]
        $region16: #{ir_model_forward.1} parent=11 // pred_fallthru
          _
        // Predicated region
        $region17: #{ir_model_forward.1} parent=11 // pred_check
          %p192 = pneg %p68
        $region18: #{ir_model_forward.1} parent=11 // pred_check_branch
          %194 = sbr.rel (%p192) target = $region20
        $region19: #{ir_model_forward.1} parent=11 // pred_region
          %s196 = ssub.s32 16, 16
          %197 = vsyncadd [#allocation5], %s196
          %s199 = sshll.u32 %s1, 4
          %s200 = int_to_ptr.vmem [resolvable:$true] %s199
          %202 = dma.vmem_to_smem %s200, 16, [#allocation4], [#allocation5]
        $region20: #{ir_model_forward.1} parent=11 // pred_fallthru
          _
        // Predicated region
        $region21: #{ir_model_forward.1} parent=11 // pred_check
          %p203 = pneg %p89
        $region22: #{ir_model_forward.1} parent=11 // pred_check_branch
          %205 = sbr.rel (%p203) target = $region24
        $region23: #{ir_model_forward.1} parent=11 // pred_region
          %s207 = ssub.s32 128, 128
          %208 = vsyncadd [#allocation5], %s207
          %s210 = sshll.u32 %s2, 4
          %s211 = int_to_ptr.vmem [resolvable:$true] %s210
          %213 = dma.vmem_to_smem %s211, 128, [#allocation6], [#allocation5]
        $region24: #{ir_model_forward.1} parent=11 // pred_fallthru
          _
        // Predicated region
        $region25: #{ir_model_forward.1} parent=11 // pred_check
          %p214 = pneg %p110
        $region26: #{ir_model_forward.1} parent=11 // pred_check_branch
          %216 = sbr.rel (%p214) target = $region28
        $region27: #{ir_model_forward.1} parent=11 // pred_region
          %s218 = ssub.s32 16, 16
          %219 = vsyncadd [#allocation8], %s218
          %s221 = sshll.u32 %s3, 4
          %s222 = int_to_ptr.vmem [resolvable:$true] %s221
          %224 = dma.vmem_to_smem %s222, 16, [#allocation7], [#allocation8]
        $region28: #{ir_model_forward.1} parent=11 // pred_fallthru
          _
      $region12: #{ir_model_forward.1} parent=5 // pred_fallthru
        _
      %p225 = scmp.lt.s32.totalorder %s14, 4
      // Predicated region
      $region29: #{ir_model_forward.1} parent=5 // pred_check
        %p226 = pneg %p225
      $region30: #{ir_model_forward.1} parent=5 // pred_check_branch
        %228 = sbr.rel (%p226) target = $region32
      $region31: #{ir_model_forward.1} parent=5 // pred_region
        // Predicated region
        $region33: #{ir_model_forward.1} parent=31 // pred_check
          %p229 = pneg %p132
        $region34: #{ir_model_forward.1} parent=31 // pred_check_branch
          %231 = sbr.rel (%p229) target = $region36
        $region35: #{ir_model_forward.1} parent=31 // pred_region
          %p232 = scmp.lt.s32.totalorder %s21, 1
          %s233 = scalar_select %p232, %s21, 1
          %p234 = scmp.lt.s32.totalorder %s22, 1
          %s235 = scalar_select %p234, %s22, 1
          %s236 = smul.addr %s233, 2
          %s237 = sadd.s32 %s235, %s236
          %s238 = smul.addr %s237, 4
          %s239 = scalar_lea.vmem %s4, %s238
        $region36: #{ir_model_forward.1} parent=31 // pred_fallthru
          _
      $region32: #{ir_model_forward.1} parent=5 // pred_fallthru
        _
      %p240 = scmp.le.s32.totalorder 1, %s14
      %p241 = scmp.lt.s32.totalorder %s14, 5
      %p242 = pnand %p240, %p241
      %p243 = pneg %p242
      // Predicated region
      $region37: #{ir_model_forward.1} parent=5 // pred_check
        _
      $region38: #{ir_model_forward.1} parent=5 // pred_check_branch
        %245 = sbr.rel (%p242) target = $region40
      $region39: #{ir_model_forward.1} parent=5 // pred_region
        %s246 = ssub.s32 %s14, 1
        // Predicated region
        $region41: #{ir_model_forward.1} parent=39 // pred_check
          %p247 = pneg %p47
        $region42: #{ir_model_forward.1} parent=39 // pred_check_branch
          %249 = sbr.rel (%p247) target = $region44
        $region43: #{ir_model_forward.1} parent=39 // pred_region
          %250 = dma.done [#allocation3], 64
        $region44: #{ir_model_forward.1} parent=39 // pred_fallthru
          _
        // Predicated region
        $region45: #{ir_model_forward.1} parent=39 // pred_check
          %p251 = pneg %p68
        $region46: #{ir_model_forward.1} parent=39 // pred_check_branch
          %253 = sbr.rel (%p251) target = $region48
        $region47: #{ir_model_forward.1} parent=39 // pred_region
          %254 = dma.done [#allocation5], 16
        $region48: #{ir_model_forward.1} parent=39 // pred_fallthru
          _
        // Predicated region
        $region49: #{ir_model_forward.1} parent=39 // pred_check
          %p255 = pneg %p89
        $region50: #{ir_model_forward.1} parent=39 // pred_check_branch
          %257 = sbr.rel (%p255) target = $region52
        $region51: #{ir_model_forward.1} parent=39 // pred_region
          %258 = dma.done [#allocation5], 128
        $region52: #{ir_model_forward.1} parent=39 // pred_fallthru
          _
        // Predicated region
        $region53: #{ir_model_forward.1} parent=39 // pred_check
          %p259 = pneg %p110
        $region54: #{ir_model_forward.1} parent=39 // pred_check_branch
          %261 = sbr.rel (%p259) target = $region56
        $region55: #{ir_model_forward.1} parent=39 // pred_region
          %262 = dma.done [#allocation8], 16
        $region56: #{ir_model_forward.1} parent=39 // pred_fallthru
          _
        %263 = sfence
        %p264 = pneg %p47
        %p265 = pneg %p44
        %p266 = pneg %p68
        %p267 = pneg %p65
        %p268 = pneg %p89
        %p269 = pneg %p86
        %p270 = pneg %p110
        %p271 = pneg %p107
        %p272 = scmp.lt.s32.totalorder %s23, 1
        %s273 = scalar_select %p272, %s23, 1
        %p274 = scmp.lt.s32.totalorder %s24, 1
        %s275 = scalar_select %p274, %s24, 1
        %s276 = smul.addr %s273, 2
        %s277 = sadd.s32 %s275, %s276
        %s278 = smul.addr %s277, 4
        %s279 = scalar_lea.vmem %s4, %s278
        %p280 = pneg %p138
        %p281 = pneg %p135
        %p282 = pneg %p166
        %p283 = pneg %p163
        %p284 = scmp.lt.s32.totalorder %s23, 1
        %s285 = scalar_select %p284, %s23, 1
        %p286 = scmp.lt.s32.totalorder %s24, 1
        %s287 = scalar_select %p286, %s24, 1
        %s288 = smul.addr %s285, 2
        %s289 = sadd.s32 %s287, %s288
        %s290 = smul.addr %s289, 8
        %s291 = scalar_lea.vmem %s5, %s290
        %p292 = scmp.lt.s32.totalorder %s23, 1
        %s293 = scalar_select %p292, %s23, 1
        %p294 = scmp.lt.s32.totalorder %s24, 1
        %s295 = scalar_select %p294, %s24, 1
        %s296 = smul.addr %s293, 2
        %s297 = sadd.s32 %s295, %s296
        %s298 = smul.addr %s297, 4
        %s299 = scalar_lea.vmem %s4, %s298
        %p300 = scmp.lt.s32.totalorder %s23, 1
        %s301 = scalar_select %p300, %s23, 1
        %p302 = scmp.lt.s32.totalorder %s24, 1
        %s303 = scalar_select %p302, %s24, 1
        %s304 = smul.addr %s301, 2
        %s305 = sadd.s32 %s303, %s304
        %s306 = smul.addr %s305, 8
        %s307 = scalar_lea.vmem %s5, %s306
        %v308 = vld [vmem:[%s299] sm:$0xf]
        %s309 = sld [smem:[#allocation2]]
        %v310 = vstv %s309
        %v311 = vmul.f32 %v308, %v310
        %s312 = sld [smem:[#allocation2 + $0x1]]
        %v313 = vstv %s312
        %v314 = vmul.f32 %v308, %v313
        %v316 = vrot.slane %v314, 1
        %v318 = vadd.f32 %v311, %v316
        %s319 = sld [smem:[#allocation2 + $0x2]]
        %v320 = vstv %s319
        %v321 = vmul.f32 %v308, %v320
        %v323 = vrot.slane %v321, 2
        %v325 = vadd.f32 %v318, %v323
        %s326 = sld [smem:[#allocation2 + $0x3]]
        %v327 = vstv %s326
        %v328 = vmul.f32 %v308, %v327
        %v330 = vrot.slane %v328, 3
        %v332 = vadd.f32 %v325, %v330
        %s333 = sld [smem:[#allocation4]]
        %v334 = vstv %s333
        %v335 = vadd.f32 %v332, %v334
        %vm336 = vcmp.ge.f32.partialorder %v335, 0.0
        %v337 = vmul.f32 %v335, 0.2
        %v338 = vsel %vm336, %v335, %v337
        %s339 = sld [smem:[#allocation2 + $0x80]]
        %v340 = vstv %s339
        %v341 = vmul.f32 %v308, %v340
        %s342 = sld [smem:[#allocation2 + $0x81]]
        %v343 = vstv %s342
        %v344 = vmul.f32 %v308, %v343
        %v346 = vrot.slane %v344, 1
        %v348 = vadd.f32 %v341, %v346
        %s349 = sld [smem:[#allocation2 + $0x82]]
        %v350 = vstv %s349
        %v351 = vmul.f32 %v308, %v350
        %v353 = vrot.slane %v351, 2
        %v355 = vadd.f32 %v348, %v353
        %s356 = sld [smem:[#allocation2 + $0x83]]
        %v357 = vstv %s356
        %v358 = vmul.f32 %v308, %v357
        %v360 = vrot.slane %v358, 3
        %v362 = vadd.f32 %v355, %v360
        %s363 = sld [smem:[#allocation4 + $0x1]]
        %v364 = vstv %s363
        %v365 = vadd.f32 %v362, %v364
        %vm366 = vcmp.ge.f32.partialorder %v365, 0.0
        %v367 = vmul.f32 %v365, 0.2
        %v368 = vsel %vm366, %v365, %v367
        %s369 = sld [smem:[#allocation2 + $0x100]]
        %v370 = vstv %s369
        %v371 = vmul.f32 %v308, %v370
        %s372 = sld [smem:[#allocation2 + $0x101]]
        %v373 = vstv %s372
        %v374 = vmul.f32 %v308, %v373
        %v376 = vrot.slane %v374, 1
        %v378 = vadd.f32 %v371, %v376
        %s379 = sld [smem:[#allocation2 + $0x102]]
        %v380 = vstv %s379
        %v381 = vmul.f32 %v308, %v380
        %v383 = vrot.slane %v381, 2
        %v385 = vadd.f32 %v378, %v383
        %s386 = sld [smem:[#allocation2 + $0x103]]
        %v387 = vstv %s386
        %v388 = vmul.f32 %v308, %v387
        %v390 = vrot.slane %v388, 3
        %v392 = vadd.f32 %v385, %v390
        %s393 = sld [smem:[#allocation4 + $0x2]]
        %v394 = vstv %s393
        %v395 = vadd.f32 %v392, %v394
        %vm396 = vcmp.ge.f32.partialorder %v395, 0.0
        %v397 = vmul.f32 %v395, 0.2
        %v398 = vsel %vm396, %v395, %v397
        %s399 = sld [smem:[#allocation2 + $0x180]]
        %v400 = vstv %s399
        %v401 = vmul.f32 %v308, %v400
        %s402 = sld [smem:[#allocation2 + $0x181]]
        %v403 = vstv %s402
        %v404 = vmul.f32 %v308, %v403
        %v406 = vrot.slane %v404, 1
        %v408 = vadd.f32 %v401, %v406
        %s409 = sld [smem:[#allocation2 + $0x182]]
        %v410 = vstv %s409
        %v411 = vmul.f32 %v308, %v410
        %v413 = vrot.slane %v411, 2
        %v415 = vadd.f32 %v408, %v413
        %s416 = sld [smem:[#allocation2 + $0x183]]
        %v417 = vstv %s416
        %v418 = vmul.f32 %v308, %v417
        %v420 = vrot.slane %v418, 3
        %v422 = vadd.f32 %v415, %v420
        %s423 = sld [smem:[#allocation4 + $0x3]]
        %v424 = vstv %s423
        %v425 = vadd.f32 %v422, %v424
        %vm426 = vcmp.ge.f32.partialorder %v425, 0.0
        %v427 = vmul.f32 %v425, 0.2
        %v428 = vsel %vm426, %v425, %v427
        %s429 = sld [smem:[#allocation6]]
        %v430 = vstv %s429
        %v431 = vmul.f32 %v338, %v430
        %s432 = sld [smem:[#allocation6 + $0x1]]
        %v433 = vstv %s432
        %v434 = vmul.f32 %v368, %v433
        %v435 = vadd.f32 %v431, %v434
        %s436 = sld [smem:[#allocation6 + $0x2]]
        %v437 = vstv %s436
        %v438 = vmul.f32 %v398, %v437
        %v439 = vadd.f32 %v435, %v438
        %s440 = sld [smem:[#allocation6 + $0x3]]
        %v441 = vstv %s440
        %v442 = vmul.f32 %v428, %v441
        %v443 = vadd.f32 %v439, %v442
        %s444 = sld [smem:[#allocation7]]
        %v445 = vstv %s444
        %v446 = vadd.f32 %v443, %v445
        %s447 = sld [smem:[#allocation6 + $0x80]]
        %v448 = vstv %s447
        %v449 = vmul.f32 %v338, %v448
        %s450 = sld [smem:[#allocation6 + $0x81]]
        %v451 = vstv %s450
        %v452 = vmul.f32 %v368, %v451
        %v453 = vadd.f32 %v449, %v452
        %s454 = sld [smem:[#allocation6 + $0x82]]
        %v455 = vstv %s454
        %v456 = vmul.f32 %v398, %v455
        %v457 = vadd.f32 %v453, %v456
        %s458 = sld [smem:[#allocation6 + $0x83]]
        %v459 = vstv %s458
        %v460 = vmul.f32 %v428, %v459
        %v461 = vadd.f32 %v457, %v460
        %s462 = sld [smem:[#allocation7 + $0x1]]
        %v463 = vstv %s462
        %v464 = vadd.f32 %v461, %v463
        %s465 = sld [smem:[#allocation6 + $0x100]]
        %v466 = vstv %s465
        %v467 = vmul.f32 %v338, %v466
        %s468 = sld [smem:[#allocation6 + $0x101]]
        %v469 = vstv %s468
        %v470 = vmul.f32 %v368, %v469
        %v471 = vadd.f32 %v467, %v470
        %s472 = sld [smem:[#allocation6 + $0x102]]
        %v473 = vstv %s472
        %v474 = vmul.f32 %v398, %v473
        %v475 = vadd.f32 %v471, %v474
        %s476 = sld [smem:[#allocation6 + $0x103]]
        %v477 = vstv %s476
        %v478 = vmul.f32 %v428, %v477
        %v479 = vadd.f32 %v475, %v478
        %s480 = sld [smem:[#allocation7 + $0x2]]
        %v481 = vstv %s480
        %v482 = vadd.f32 %v479, %v481
        %s483 = sld [smem:[#allocation6 + $0x180]]
        %v484 = vstv %s483
        %v485 = vmul.f32 %v338, %v484
        %s486 = sld [smem:[#allocation6 + $0x181]]
        %v487 = vstv %s486
        %v488 = vmul.f32 %v368, %v487
        %v489 = vadd.f32 %v485, %v488
        %s490 = sld [smem:[#allocation6 + $0x182]]
        %v491 = vstv %s490
        %v492 = vmul.f32 %v398, %v491
        %v493 = vadd.f32 %v489, %v492
        %s494 = sld [smem:[#allocation6 + $0x183]]
        %v495 = vstv %s494
        %v496 = vmul.f32 %v428, %v495
        %v497 = vadd.f32 %v493, %v496
        %s498 = sld [smem:[#allocation7 + $0x3]]
        %v499 = vstv %s498
        %v500 = vadd.f32 %v497, %v499
        %s501 = sld [smem:[#allocation6 + $0x200]]
        %v502 = vstv %s501
        %v503 = vmul.f32 %v338, %v502
        %s504 = sld [smem:[#allocation6 + $0x201]]
        %v505 = vstv %s504
        %v506 = vmul.f32 %v368, %v505
        %v507 = vadd.f32 %v503, %v506
        %s508 = sld [smem:[#allocation6 + $0x202]]
        %v509 = vstv %s508
        %v510 = vmul.f32 %v398, %v509
        %v511 = vadd.f32 %v507, %v510
        %s512 = sld [smem:[#allocation6 + $0x203]]
        %v513 = vstv %s512
        %v514 = vmul.f32 %v428, %v513
        %v515 = vadd.f32 %v511, %v514
        %s516 = sld [smem:[#allocation7 + $0x4]]
        %v517 = vstv %s516
        %v518 = vadd.f32 %v515, %v517
        %s519 = sld [smem:[#allocation6 + $0x280]]
        %v520 = vstv %s519
        %v521 = vmul.f32 %v338, %v520
        %s522 = sld [smem:[#allocation6 + $0x281]]
        %v523 = vstv %s522
        %v524 = vmul.f32 %v368, %v523
        %v525 = vadd.f32 %v521, %v524
        %s526 = sld [smem:[#allocation6 + $0x282]]
        %v527 = vstv %s526
        %v528 = vmul.f32 %v398, %v527
        %v529 = vadd.f32 %v525, %v528
        %s530 = sld [smem:[#allocation6 + $0x283]]
        %v531 = vstv %s530
        %v532 = vmul.f32 %v428, %v531
        %v533 = vadd.f32 %v529, %v532
        %s534 = sld [smem:[#allocation7 + $0x5]]
        %v535 = vstv %s534
        %v536 = vadd.f32 %v533, %v535
        %s537 = sld [smem:[#allocation6 + $0x300]]
        %v538 = vstv %s537
        %v539 = vmul.f32 %v338, %v538
        %s540 = sld [smem:[#allocation6 + $0x301]]
        %v541 = vstv %s540
        %v542 = vmul.f32 %v368, %v541
        %v543 = vadd.f32 %v539, %v542
        %s544 = sld [smem:[#allocation6 + $0x302]]
        %v545 = vstv %s544
        %v546 = vmul.f32 %v398, %v545
        %v547 = vadd.f32 %v543, %v546
        %s548 = sld [smem:[#allocation6 + $0x303]]
        %v549 = vstv %s548
        %v550 = vmul.f32 %v428, %v549
        %v551 = vadd.f32 %v547, %v550
        %s552 = sld [smem:[#allocation7 + $0x6]]
        %v553 = vstv %s552
        %v554 = vadd.f32 %v551, %v553
        %s555 = sld [smem:[#allocation6 + $0x380]]
        %v556 = vstv %s555
        %v557 = vmul.f32 %v338, %v556
        %s558 = sld [smem:[#allocation6 + $0x381]]
        %v559 = vstv %s558
        %v560 = vmul.f32 %v368, %v559
        %v561 = vadd.f32 %v557, %v560
        %s562 = sld [smem:[#allocation6 + $0x382]]
        %v563 = vstv %s562
        %v564 = vmul.f32 %v398, %v563
        %v565 = vadd.f32 %v561, %v564
        %s566 = sld [smem:[#allocation6 + $0x383]]
        %v567 = vstv %s566
        %v568 = vmul.f32 %v428, %v567
        %v569 = vadd.f32 %v565, %v568
        %s570 = sld [smem:[#allocation7 + $0x7]]
        %v571 = vstv %s570
        %v572 = vadd.f32 %v569, %v571
        %v574 = vrot.slane %v464, 7
        %v577 = vrot.slane %v482, 6
        %v580 = vrot.slane %v500, 5
        %v583 = vrot.slane %v518, 4
        %v586 = vrot.slane %v536, 3
        %v589 = vrot.slane %v554, 2
        %v592 = vrot.slane %v572, 1
        %vm594 = vcmask 1040384
        %v595 = vsel %vm594, %v446, %v574
        %vm596 = vcmask 1041408
        %v597 = vsel %vm596, %v595, %v577
        %vm598 = vcmask 1042432
        %v599 = vsel %vm598, %v597, %v580
        %vm600 = vcmask 1043456
        %v601 = vsel %vm600, %v599, %v583
        %vm602 = vcmask 1044480
        %v603 = vsel %vm602, %v601, %v586
        %vm604 = vcmask 1045504
        %v605 = vsel %vm604, %v603, %v589
        %vm606 = vcmask 1046528
        %v607 = vsel %vm606, %v605, %v592
        %608 = vst [vmem:[%s307] sm:$0xff] %v607
        %p609 = scmp.lt.s32.totalorder %s23, 1
        %s610 = scalar_select %p609, %s23, 1
        %p611 = scmp.lt.s32.totalorder %s24, 1
        %s612 = scalar_select %p611, %s24, 1
        %s613 = smul.addr %s610, 2
        %s614 = sadd.s32 %s612, %s613
        %s615 = smul.addr %s614, 8
        %s616 = scalar_lea.vmem %s5, %s615
        // Predicated region
        $region57: #{ir_model_forward.1} parent=39 // pred_check
          %p617 = pneg %p163
        $region58: #{ir_model_forward.1} parent=39 // pred_check_branch
          %619 = sbr.rel (%p617) target = $region60
        $region59: #{ir_model_forward.1} parent=39 // pred_region
          _
        $region60: #{ir_model_forward.1} parent=39 // pred_fallthru
          _
      $region40: #{ir_model_forward.1} parent=5 // pred_fallthru
        _
      %p620 = scmp.le.s32.totalorder 2, %s14
      // Predicated region
      $region61: #{ir_model_forward.1} parent=5 // pred_check
        %p621 = pneg %p620
      $region62: #{ir_model_forward.1} parent=5 // pred_check_branch
        %623 = sbr.rel (%p621) target = $region64
      $region63: #{ir_model_forward.1} parent=5 // pred_region
        %s624 = ssub.s32 %s14, 2
        // Predicated region
        $region65: #{ir_model_forward.1} parent=63 // pred_check
          %p625 = pneg %p169
        $region66: #{ir_model_forward.1} parent=63 // pred_check_branch
          %627 = sbr.rel (%p625) target = $region68
        $region67: #{ir_model_forward.1} parent=63 // pred_region
          %p628 = scmp.lt.s32.totalorder %s25, 1
          %s629 = scalar_select %p628, %s25, 1
          %p630 = scmp.lt.s32.totalorder %s26, 1
          %s631 = scalar_select %p630, %s26, 1
          %s632 = smul.addr %s629, 2
          %s633 = sadd.s32 %s631, %s632
          %s634 = smul.addr %s633, 8
          %s635 = scalar_lea.vmem %s5, %s634
        $region68: #{ir_model_forward.1} parent=63 // pred_fallthru
          _
      $region64: #{ir_model_forward.1} parent=5 // pred_fallthru
        _
    $region6: #{ir_model_forward.1} parent=1 // loop_footer
      %s18 = sadd.s32 1, %s14
    $region7: #{ir_model_forward.1} parent=1 // loop_footer_branch
      %13 = sbr.rel target = $region3
    $region8: #{ir_model_forward.1} parent=1 // loop_exit
      _
    %636 = vsyncpa [#allocation3], 1
    %s637 = scalar_lea.sflag [#allocation3], 1
    %638 = vsyncpa %s637, 1
    %639 = vsyncpa [#allocation5], 1
    %640 = vsyncpa [#allocation8], 1

</llo_original>
